<compile_context>
chip_gen: v5e
topology: v5e:2x2
jax: 0.10.0
libtpu: 0.0.40
codegen_flags: <defaults>
</compile_context>

<pallas_src>
import jax
import jax.numpy as jnp
from jax import lax
from jax.experimental import pallas as pl
from jax.experimental.pallas import tpu as pltpu


def _round_up(x, m):
    return ((x + m - 1) // m) * m


def _fused_kernel(params_ref, x_ref, o_ref):
    """Fused permute + linear0 + linear1 + ELU(alpha=0) + add + re-layout.

    params_ref : SMEM (12,) f32 = [W0 (4), Wc=W1@W0 (4), b0 (2), bc=W1@b0 (2)]
    x_ref      : VMEM (1, 2, g, 128)  tile of x1 viewed as (B, D, S//128, 128)
    o_ref      : VMEM (1, g, 256)     tile of the flat (B, S//128, 2*128) output
    """
    x = x_ref[...]                        # (1, 2, g, 128) f32
    x0 = x[:, 0]                          # (1, g, 128)  feature-input 0 (hoisted)
    x1 = x[:, 1]                          # (1, g, 128)  feature-input 1 (hoisted)

    w000 = params_ref[0]
    w001 = params_ref[1]
    w010 = params_ref[2]
    w011 = params_ref[3]
    wc00 = params_ref[4]
    wc01 = params_ref[5]
    wc10 = params_ref[6]
    wc11 = params_ref[7]
    b00 = params_ref[8]
    b01 = params_ref[9]
    bc0 = params_ref[10]
    bc1 = params_ref[11]

    zero = jnp.float32(0.0)
    # ELU(alpha=0) == ReLU.  Output feature j = relu(v2_j) + relu(v3_j),
    # still lane-dense over s.  Pure broadcast VPU work (D == 2, MXU skipped).
    y0 = (jnp.maximum(w000 * x0 + w001 * x1 + b00, zero)
          + jnp.maximum(wc00 * x0 + wc01 * x1 + bc0, zero))    # (1, g, 128)
    y1 = (jnp.maximum(w010 * x0 + w011 * x1 + b01, zero)
          + jnp.maximum(wc10 * x0 + wc11 * x1 + bc1, zero))    # (1, g, 128)

    # Interleave the two feature rows onto lanes (s-major, d-minor == the
    # final (B, S, D) HBM layout) with a 0/1 spread matmul on the idle MXU:
    #   z[..., 2i] = y0[..., i],  z[..., 2i+1] = y1[..., i]
    src = lax.broadcasted_iota(jnp.int32, (128, 256), 0)       # source lane
    dst = lax.broadcasted_iota(jnp.int32, (128, 256), 1)       # dest lane
    one = jnp.float32(1.0)
    e0 = jnp.where(dst == 2 * src, one, zero)                  # (128, 256)
    e1 = jnp.where(dst == 2 * src + 1, one, zero)              # (128, 256)

    for b in range(x_ref.shape[0]):                            # static (== 1)
        zb = (jnp.dot(y0[b], e0, preferred_element_type=jnp.float32)
              + jnp.dot(y1[b], e1, preferred_element_type=jnp.float32))
        o_ref[b] = zb.astype(o_ref.dtype)                      # direct lane-dense store


def model_forward(x1, w0, b0, w1):
    """x1: (B, 2, S) f32; w0, w1: (2, 2); b0: (2,).  Returns (B, S, 2) f32."""
    B, D, S = x1.shape
    assert D == 2 and w0.shape == (2, 2) and w1.shape == (2, 2) and b0.shape == (2,)

    # Trace-time fold of linear1 into linear0.  Valid because the inplace ELU
    # is applied to v2 only AFTER v3 = linear1(v2) has been computed, so the
    # second linear consumes the pre-activation:  v3 = x @ (W1 W0)^T + W1 b0.
    wc = w1 @ w0                                               # (2, 2)
    bc = w1 @ b0                                               # (2,)
    params = jnp.concatenate(
        [w0.reshape(-1), wc.reshape(-1), b0.reshape(-1), bc.reshape(-1)]
    ).astype(jnp.float32)                                      # (12,) flat SMEM

    # ---- tiling over S (rows of 128 lanes on the sublane axis) -------------
    if S <= 8 * 128:
        s_pad = _round_up(S, 128)                # single block of <= 8 rows
        g_blk = s_pad // 128
    else:
        s_pad = _round_up(S, 1024)               # row count multiple of 8
        g = s_pad // 128
        # largest multiple-of-8 divisor of g that is <= 64 rows (8192 lanes)
        # and leaves >= 2 grid steps (v7x megacore gets both cores busy).
        target = min(64, max(8, ((g // 2) // 8) * 8))
        g_blk = max(d for d in range(8, target + 1, 8) if g % d == 0)
    n_rows = s_pad // 128
    grid = (B, n_rows // g_blk)                  # (batch, row-tile), both parallel

    xp = x1.astype(jnp.float32)
    if s_pad != S:
        xp = jnp.pad(xp, ((0, 0), (0, 0), (0, s_pad - S)))     # zero tail
    xr = xp.reshape(B, D, n_rows, 128)           # contiguous split: free

    out_flat = pl.pallas_call(
        _fused_kernel,
        out_shape=jax.ShapeDtypeStruct((B, n_rows, 256), jnp.float32),
        grid=grid,
        in_specs=[
            pl.BlockSpec(memory_space=pltpu.SMEM),                    # params, resident
            pl.BlockSpec((1, D, g_blk, 128), lambda b, i: (b, 0, i, 0)),
        ],
        out_specs=pl.BlockSpec((1, g_blk, 256), lambda b, i: (b, i, 0)),
        compiler_params=pltpu.CompilerParams(
            dimension_semantics=("parallel", "parallel")),
    )(params, xr)

    out = out_flat.reshape(B, s_pad, D)          # contiguous merge: free
    if s_pad != S:
        out = out[:, :S, :]
    return out


def _reference(x1, w0, b0, w1):
    # Plain-JAX reference of the original (unfused) module math.
    v1 = jnp.transpose(x1, (0, 2, 1))
    v2 = v1 @ w0.T + b0
    v3 = v2 @ w1.T                               # pre-activation v2, no bias
    return jnp.maximum(v2, 0.0) + jnp.maximum(v3, 0.0)


if __name__ == "__main__":
    key = jax.random.PRNGKey(0)
    k_x, k_w0, k_b0, k_w1, k_xs = jax.random.split(key, 5)

    # D is fixed at 2 by the module (Linear(2, 2)).
    B, D, S = 2, 2, 1024
    x1 = jax.random.normal(k_x, (B, D, S), dtype=jnp.float32)

    # PyTorch Linear default init: U(-1/sqrt(in_features), 1/sqrt(in_features))
    bound = 1.0 / (D ** 0.5)
    w0 = jax.random.uniform(k_w0, (D, D), jnp.float32, -bound, bound)
    b0 = jax.random.uniform(k_b0, (D,), jnp.float32, -bound, bound)
    w1 = jax.random.uniform(k_w1, (D, D), jnp.float32, -bound, bound)

    fwd = jax.jit(model_forward)

    out = fwd(x1, w0, b0, w1)
    jax.block_until_ready(out)
    ref = _reference(x1, w0, b0, w1)
    assert out.shape == (B, S, D)
    assert jnp.allclose(out, ref, atol=1e-5, rtol=1e-5)

    # Also exercise the exact spec shape (1, 2, 2) -> padding / tail path.
    x_small = jax.random.normal(k_xs, (1, 2, 2), dtype=jnp.float32)
    out_small = fwd(x_small, w0, b0, w1)
    jax.block_until_ready(out_small)
    ref_small = _reference(x_small, w0, b0, w1)
    assert out_small.shape == (1, 2, 2)
    assert jnp.allclose(out_small, ref_small, atol=1e-5, rtol=1e-5)

    print("KERNEL_OK")
</pallas_src>

<mosaic_0001>
module attributes {stable_mosaic.version = 11 : i64} {
  func.func @_fused_kernel(%arg0: i32, %arg1: i32, %arg2: memref<12xf32, #tpu.memory_space<smem>>, %arg3: memref<1x2x8x128xf32, #tpu.memory_space<vmem>>, %arg4: memref<1x8x256xf32, #tpu.memory_space<vmem>>) attributes {dimension_semantics = [#tpu.dimension_semantics<parallel>, #tpu.dimension_semantics<parallel>], iteration_bounds = array<i64: 2, 1>, scalar_prefetch = 0 : i64, scratch_operands = 0 : i64, tpu.core_type = #tpu.core_type<tc>, window_params = [{transform_indices = @transform_0, window_bounds = array<i64: 12>}, {transform_indices = @transform_1, window_bounds = array<i64: 1, 2, 8, 128>}, {transform_indices = @transform_2, window_bounds = array<i64: 1, 8, 256>}]} {
    %c0 = arith.constant 0 : index
    %c0_0 = arith.constant 0 : index
    %c0_1 = arith.constant 0 : index
    %c0_2 = arith.constant 0 : index
    %0 = vector.load %arg3[%c0, %c0_0, %c0_1, %c0_2] : memref<1x2x8x128xf32, #tpu.memory_space<vmem>>, vector<1x2x8x128xf32>
    %1 = vector.extract_strided_slice %0 {offsets = [0, 0, 0, 0], sizes = [1, 1, 8, 128], strides = [1, 1, 1, 1]} : vector<1x2x8x128xf32> to vector<1x1x8x128xf32>
    %2 = vector.shape_cast %1 : vector<1x1x8x128xf32> to vector<1x8x128xf32>
    %3 = vector.extract_strided_slice %0 {offsets = [0, 1, 0, 0], sizes = [1, 1, 8, 128], strides = [1, 1, 1, 1]} : vector<1x2x8x128xf32> to vector<1x1x8x128xf32>
    %4 = vector.shape_cast %3 : vector<1x1x8x128xf32> to vector<1x8x128xf32>
    %c0_3 = arith.constant 0 : index
    %5 = memref.load %arg2[%c0_3] : memref<12xf32, #tpu.memory_space<smem>>
    %c1 = arith.constant 1 : index
    %6 = memref.load %arg2[%c1] : memref<12xf32, #tpu.memory_space<smem>>
    %c2 = arith.constant 2 : index
    %7 = memref.load %arg2[%c2] : memref<12xf32, #tpu.memory_space<smem>>
    %c3 = arith.constant 3 : index
    %8 = memref.load %arg2[%c3] : memref<12xf32, #tpu.memory_space<smem>>
    %c4 = arith.constant 4 : index
    %9 = memref.load %arg2[%c4] : memref<12xf32, #tpu.memory_space<smem>>
    %c5 = arith.constant 5 : index
    %10 = memref.load %arg2[%c5] : memref<12xf32, #tpu.memory_space<smem>>
    %c6 = arith.constant 6 : index
    %11 = memref.load %arg2[%c6] : memref<12xf32, #tpu.memory_space<smem>>
    %c7 = arith.constant 7 : index
    %12 = memref.load %arg2[%c7] : memref<12xf32, #tpu.memory_space<smem>>
    %c8 = arith.constant 8 : index
    %13 = memref.load %arg2[%c8] : memref<12xf32, #tpu.memory_space<smem>>
    %c9 = arith.constant 9 : index
    %14 = memref.load %arg2[%c9] : memref<12xf32, #tpu.memory_space<smem>>
    %c10 = arith.constant 10 : index
    %15 = memref.load %arg2[%c10] : memref<12xf32, #tpu.memory_space<smem>>
    %c11 = arith.constant 11 : index
    %16 = memref.load %arg2[%c11] : memref<12xf32, #tpu.memory_space<smem>>
    %17 = vector.broadcast %5 : f32 to vector<1x8x128xf32>
    %18 = arith.mulf %17, %2 : vector<1x8x128xf32>
    %19 = vector.broadcast %6 : f32 to vector<1x8x128xf32>
    %20 = arith.mulf %19, %4 : vector<1x8x128xf32>
    %21 = arith.addf %18, %20 : vector<1x8x128xf32>
    %22 = vector.broadcast %13 : f32 to vector<1x8x128xf32>
    %23 = arith.addf %21, %22 : vector<1x8x128xf32>
    %cst = arith.constant 0.000000e+00 : f32
    %24 = vector.broadcast %cst : f32 to vector<1x8x128xf32>
    %25 = arith.maximumf %23, %24 : vector<1x8x128xf32>
    %26 = vector.broadcast %9 : f32 to vector<1x8x128xf32>
    %27 = arith.mulf %26, %2 : vector<1x8x128xf32>
    %28 = vector.broadcast %10 : f32 to vector<1x8x128xf32>
    %29 = arith.mulf %28, %4 : vector<1x8x128xf32>
    %30 = arith.addf %27, %29 : vector<1x8x128xf32>
    %31 = vector.broadcast %15 : f32 to vector<1x8x128xf32>
    %32 = arith.addf %30, %31 : vector<1x8x128xf32>
    %cst_4 = arith.constant 0.000000e+00 : f32
    %33 = vector.broadcast %cst_4 : f32 to vector<1x8x128xf32>
    %34 = arith.maximumf %32, %33 : vector<1x8x128xf32>
    %35 = arith.addf %25, %34 : vector<1x8x128xf32>
    %36 = vector.broadcast %7 : f32 to vector<1x8x128xf32>
    %37 = arith.mulf %36, %2 : vector<1x8x128xf32>
    %38 = vector.broadcast %8 : f32 to vector<1x8x128xf32>
    %39 = arith.mulf %38, %4 : vector<1x8x128xf32>
    %40 = arith.addf %37, %39 : vector<1x8x128xf32>
    %41 = vector.broadcast %14 : f32 to vector<1x8x128xf32>
    %42 = arith.addf %40, %41 : vector<1x8x128xf32>
    %cst_5 = arith.constant 0.000000e+00 : f32
    %43 = vector.broadcast %cst_5 : f32 to vector<1x8x128xf32>
    %44 = arith.maximumf %42, %43 : vector<1x8x128xf32>
    %45 = vector.broadcast %11 : f32 to vector<1x8x128xf32>
    %46 = arith.mulf %45, %2 : vector<1x8x128xf32>
    %47 = vector.broadcast %12 : f32 to vector<1x8x128xf32>
    %48 = arith.mulf %47, %4 : vector<1x8x128xf32>
    %49 = arith.addf %46, %48 : vector<1x8x128xf32>
    %50 = vector.broadcast %16 : f32 to vector<1x8x128xf32>
    %51 = arith.addf %49, %50 : vector<1x8x128xf32>
    %cst_6 = arith.constant 0.000000e+00 : f32
    %52 = vector.broadcast %cst_6 : f32 to vector<1x8x128xf32>
    %53 = arith.maximumf %51, %52 : vector<1x8x128xf32>
    %54 = arith.addf %44, %53 : vector<1x8x128xf32>
    %55 = tpu.iota {dimensions = array<i32: 0>} : vector<128x256xi32>
    %56 = tpu.iota {dimensions = array<i32: 1>} : vector<128x256xi32>
    %c2_i32 = arith.constant 2 : i32
    %57 = vector.broadcast %c2_i32 : i32 to vector<128x256xi32>
    %58 = arith.muli %57, %55 : vector<128x256xi32>
    %59 = arith.cmpi eq, %56, %58 : vector<128x256xi32>
    %cst_7 = arith.constant 1.000000e+00 : f32
    %cst_8 = arith.constant 0.000000e+00 : f32
    %60 = vector.broadcast %cst_7 : f32 to vector<128x256xf32>
    %61 = vector.broadcast %cst_8 : f32 to vector<128x256xf32>
    %62 = arith.select %59, %60, %61 : vector<128x256xi1>, vector<128x256xf32>
    %c2_i32_9 = arith.constant 2 : i32
    %63 = vector.broadcast %c2_i32_9 : i32 to vector<128x256xi32>
    %64 = arith.muli %63, %55 : vector<128x256xi32>
    %c1_i32 = arith.constant 1 : i32
    %65 = vector.broadcast %c1_i32 : i32 to vector<128x256xi32>
    %66 = arith.addi %64, %65 : vector<128x256xi32>
    %67 = arith.cmpi eq, %56, %66 : vector<128x256xi32>
    %cst_10 = arith.constant 1.000000e+00 : f32
    %cst_11 = arith.constant 0.000000e+00 : f32
    %68 = vector.broadcast %cst_10 : f32 to vector<128x256xf32>
    %69 = vector.broadcast %cst_11 : f32 to vector<128x256xf32>
    %70 = arith.select %67, %68, %69 : vector<128x256xi1>, vector<128x256xf32>
    %71 = vector.shape_cast %35 : vector<1x8x128xf32> to vector<8x128xf32>
    %cst_12 = arith.constant dense<0.000000e+00> : vector<8x256xf32>
    %72 = tpu.matmul %71, %62, %cst_12 {dimension_numbers = #tpu.dot_dimension_numbers<[1], [0], [0], [1], [0, 0, 1, 1], [], []>} : vector<8x128xf32>, vector<128x256xf32>, vector<8x256xf32> -> vector<8x256xf32>
    %73 = vector.shape_cast %54 : vector<1x8x128xf32> to vector<8x128xf32>
    %cst_13 = arith.constant dense<0.000000e+00> : vector<8x256xf32>
    %74 = tpu.matmul %73, %70, %cst_13 {dimension_numbers = #tpu.dot_dimension_numbers<[1], [0], [0], [1], [0, 0, 1, 1], [], []>} : vector<8x128xf32>, vector<128x256xf32>, vector<8x256xf32> -> vector<8x256xf32>
    %75 = arith.addf %72, %74 : vector<8x256xf32>
    %c0_14 = arith.constant 0 : index
    %c0_15 = arith.constant 0 : index
    %c0_16 = arith.constant 0 : index
    %76 = vector.load %arg4[%c0_14, %c0_15, %c0_16] : memref<1x8x256xf32, #tpu.memory_space<vmem>>, vector<1x8x256xf32>
    %77 = vector.shape_cast %76 : vector<1x8x256xf32> to vector<8x256xf32>
    %78 = vector.shape_cast %75 : vector<8x256xf32> to vector<1x8x256xf32>
    tpu.vector_store %arg4[%c0_14, %c0_15, %c0_16], %78 {strides = array<i32>} : memref<1x8x256xf32, #tpu.memory_space<vmem>>, vector<1x8x256xf32>,
    return
  }
  func.func @transform_0(%arg0: i32, %arg1: i32) -> i32 {
    %c0_i32 = arith.constant 0 : i32
    %c0_i32_0 = arith.constant 0 : i32
    return %c0_i32 : i32
  }
  func.func @transform_1(%arg0: i32, %arg1: i32) -> (i32, i32, i32, i32) {
    %c0_i32 = arith.constant 0 : i32
    %c0_i32_0 = arith.constant 0 : i32
    %c0_i32_1 = arith.constant 0 : i32
    return %arg0, %c0_i32, %arg1, %c0_i32_0 : i32, i32, i32, i32
  }
  func.func @transform_2(%arg0: i32, %arg1: i32) -> (i32, i32, i32) {
    %c0_i32 = arith.constant 0 : i32
    %c0_i32_0 = arith.constant 0 : i32
    return %arg0, %arg1, %c0_i32 : i32, i32, i32
  }
}

</mosaic_0001>

<llo_original>
// kernel: model_forward.1
$region0: #{model_forward.1}
  #allocation0 [shape = 'u32[]', space=smem, size = 0x4, offset = 0x4, fixed_abs, tag = 'smem constant byte address 0x4 - core index']
  #allocation1 [shape = 'u32[72,128]{1,0:T(1,128)}', space=vmem, size = 0x9000, scoped, tag = 'internal scratch']
  %s0 = inlined_call_operand.vmem [shape: f32[12], index: 0, kind: input, shape index: {}]
  %s1 = inlined_call_operand.vmem [shape: f32[2,2,8,128], index: 1, kind: input, shape index: {}]
  %s2 = inlined_call_operand.vmem [shape: f32[2,8,256], index: 2, kind: output, shape index: {}]
  %s3 = sld [smem:[#allocation0]]
  $region45: #{model_forward.1} parent=0
    _
  %s5 = ssub.s32 1, %s3
  %s6 = scalar_select 0, %s5, %s3
  $region1: #{model_forward.1} parent=0
    #allocation2 [shape = 'u8[512]{0}', space=smem, size = 0x200, scoped, tag = 'input window, operand 0, single buffered']
    #allocation3 [shape = 's32[2]{0}', space=sflag, size = 0x8, scoped, tag = 'scoped memory for model_forward.1']
    %7 = vsyncpa [#allocation3], 0
    loop: start=0, step=1, limit=4
    $region2: #{model_forward.1} parent=1 // loop_pre_header
      _
    $region3: #{model_forward.1} parent=1 // loop_header
      %s9 = sphi 0, %s13
      %p10 = scmp.ge.s32.totalorder %s9, 4
      %s16 = sphi 0, %s28
      %s17 = sphi 0, %s24
      %s18 = sphi 0, %s16
      %s19 = sphi 0, %s17
      %s20 = sphi 0, %s18
      %s21 = sphi 0, %s19
      %s29 = sphi 0, %s29
      %s31 = sphi 0, %s29
      %s32 = sphi 0, %s31
      %s46 = sphi 0, %s32
      %s54 = sphi 0, %s56
      %s57 = sphi 0, %s54
      %s58 = sphi 0, %s57
      %s74 = sphi 0, %s58
      %s82 = sphi 0, %s84
      %s85 = sphi 0, %s82
      %s86 = sphi 0, %s85
      %s102 = sphi 0, %s86
    $region4: #{model_forward.1} parent=1 // loop_header_branch
      %12 = sbr.rel (%p10) target = $region8
    $region5: #{model_forward.1} parent=1 // loop_body
      %s14 = ssub.s32 %s9, 1
      %s15 = ssub.s32 %s9, 2
      %s22 = sadd.s32 1, %s17
      %p23 = scmp.ge.s32.totalorder %s22, 1
      %s24 = scalar_select %p23, 0, %s22
      %s25 = sadd.s32 1, %s16
      %s26 = scalar_select %p23, %s25, %s16
      %p27 = scmp.ge.s32.totalorder %s26, 2
      %s28 = scalar_select %p27, 0, %s26
      %s30 = sadd.s32 %s29, 1
      %p33 = scmp.eq.s32.totalorder %s9, 1
      %p34 = scmp.ne.s32.totalorder %s29, %s31
      %p35 = scmp.eq.s32.totalorder %s9, 0
      %p36 = por %p34, %p35
      %p37 = scmp.ne.s32.totalorder %s29, %s31
      %p38 = scmp.eq.s32.totalorder %s14, 1
      %p39 = por %p37, %p38
      %p40 = scmp.ne.s32.totalorder %s31, %s32
      %p41 = scmp.eq.s32.totalorder %s14, 0
      %p42 = por %p40, %p41
      %p43 = scmp.ne.s32.totalorder %s31, %s32
      %p44 = scmp.eq.s32.totalorder %s15, 1
      %p45 = por %p43, %p44
      %p47 = scmp.ne.s32.totalorder %s32, %s46
      %p48 = scmp.eq.s32.totalorder %s15, 0
      %p49 = por %p47, %p48
      %s50 = ssub.s32 %s16, %s28
      %s51 = ssub.s32 %s17, %s24
      %s52 = sor.u32 %s50, %s51
      %p53 = scmp.eq.s32.totalorder %s52, 0
      %s55 = sadd.s32 %s54, 1
      %s56 = scalar_select %p53, %s54, %s55
      %p59 = pneg %p53
      %p60 = scmp.eq.s32.totalorder %s9, 1
      %p61 = por %p59, %p60
      %p62 = scmp.ne.s32.totalorder %s54, %s57
      %p63 = scmp.eq.s32.totalorder %s9, 0
      %p64 = por %p62, %p63
      %p65 = scmp.ne.s32.totalorder %s54, %s57
      %p66 = scmp.eq.s32.totalorder %s14, 1
      %p67 = por %p65, %p66
      %p68 = scmp.ne.s32.totalorder %s57, %s58
      %p69 = scmp.eq.s32.totalorder %s14, 0
      %p70 = por %p68, %p69
      %p71 = scmp.ne.s32.totalorder %s57, %s58
      %p72 = scmp.eq.s32.totalorder %s15, 1
      %p73 = por %p71, %p72
      %p75 = scmp.ne.s32.totalorder %s58, %s74
      %p76 = scmp.eq.s32.totalorder %s15, 0
      %p77 = por %p75, %p76
      %s78 = ssub.s32 %s16, %s28
      %s79 = ssub.s32 %s17, %s24
      %s80 = sor.u32 %s78, %s79
      %p81 = scmp.eq.s32.totalorder %s80, 0
      %s83 = sadd.s32 %s82, 1
      %s84 = scalar_select %p81, %s82, %s83
      %p87 = pneg %p81
      %p88 = scmp.eq.s32.totalorder %s9, 1
      %p89 = por %p87, %p88
      %p90 = scmp.ne.s32.totalorder %s82, %s85
      %p91 = scmp.eq.s32.totalorder %s9, 0
      %p92 = por %p90, %p91
      %p93 = scmp.ne.s32.totalorder %s82, %s85
      %p94 = scmp.eq.s32.totalorder %s14, 1
      %p95 = por %p93, %p94
      %p96 = scmp.ne.s32.totalorder %s85, %s86
      %p97 = scmp.eq.s32.totalorder %s14, 0
      %p98 = por %p96, %p97
      %p99 = scmp.ne.s32.totalorder %s85, %s86
      %p100 = scmp.eq.s32.totalorder %s15, 1
      %p101 = por %p99, %p100
      %p103 = scmp.ne.s32.totalorder %s86, %s102
      %p104 = scmp.eq.s32.totalorder %s15, 0
      %p105 = por %p103, %p104
      %p106 = scmp.le.s32.totalorder 1, %s9
      %p107 = scmp.lt.s32.totalorder %s9, 3
      %p108 = pnand %p106, %p107
      %p109 = pneg %p108
      // Predicated region
      $region9: #{model_forward.1} parent=5 // pred_check
        _
      $region10: #{model_forward.1} parent=5 // pred_check_branch
        %111 = sbr.rel (%p108) target = $region12
      $region11: #{model_forward.1} parent=5 // pred_region
        %s112 = ssub.s32 %s9, 1
        // Predicated region
        $region13: #{model_forward.1} parent=11 // pred_check
          %p113 = pneg %p42
        $region14: #{model_forward.1} parent=11 // pred_check_branch
          %115 = sbr.rel (%p113) target = $region16
        $region15: #{model_forward.1} parent=11 // pred_region
          %117 = vsyncadd [#allocation3], 0
          %s119 = sshll.u32 %s0, 4
          %s120 = int_to_ptr.vmem [resolvable:$true] %s119
          %122 = dma.vmem_to_smem %s120, 16, [#allocation2], [#allocation3]
        $region16: #{model_forward.1} parent=11 // pred_fallthru
          _
      $region12: #{model_forward.1} parent=5 // pred_fallthru
        _
      %p123 = scmp.lt.s32.totalorder %s9, 2
      // Predicated region
      $region17: #{model_forward.1} parent=5 // pred_check
        %p124 = pneg %p123
      $region18: #{model_forward.1} parent=5 // pred_check_branch
        %126 = sbr.rel (%p124) target = $region20
      $region19: #{model_forward.1} parent=5 // pred_region
        // Predicated region
        $region21: #{model_forward.1} parent=19 // pred_check
          %p127 = pneg %p64
        $region22: #{model_forward.1} parent=19 // pred_check_branch
          %129 = sbr.rel (%p127) target = $region24
        $region23: #{model_forward.1} parent=19 // pred_region
          %p130 = scmp.lt.s32.totalorder %s16, 1
          %s131 = scalar_select %p130, %s16, 1
          %p132 = scmp.lt.s32.totalorder %s17, 0
          %s133 = scalar_select %p132, %s17, 0
          %s134 = smul.addr %s131, 2
          %s135 = sadd.s32 %s133, %s134
          %s136 = smul.addr %s135, 8
          %s137 = scalar_lea.vmem %s1, %s136
        $region24: #{model_forward.1} parent=19 // pred_fallthru
          _
      $region20: #{model_forward.1} parent=5 // pred_fallthru
        _
      %p138 = scmp.le.s32.totalorder 1, %s9
      %p139 = scmp.lt.s32.totalorder %s9, 3
      %p140 = pnand %p138, %p139
      %p141 = pneg %p140
      // Predicated region
      $region25: #{model_forward.1} parent=5 // pred_check
        _
      $region26: #{model_forward.1} parent=5 // pred_check_branch
        %143 = sbr.rel (%p140) target = $region28
      $region27: #{model_forward.1} parent=5 // pred_region
        %s144 = ssub.s32 %s9, 1
        // Predicated region
        $region29: #{model_forward.1} parent=27 // pred_check
          %p145 = pneg %p42
        $region30: #{model_forward.1} parent=27 // pred_check_branch
          %147 = sbr.rel (%p145) target = $region32
        $region31: #{model_forward.1} parent=27 // pred_region
          %149 = dma.done [#allocation3], 16
        $region32: #{model_forward.1} parent=27 // pred_fallthru
          _
        %150 = sfence
        %p151 = pneg %p42
        %p152 = pneg %p39
        %p153 = scmp.lt.s32.totalorder %s18, 1
        %s154 = scalar_select %p153, %s18, 1
        %p155 = scmp.lt.s32.totalorder %s19, 0
        %s156 = scalar_select %p155, %s19, 0
        %s157 = smul.addr %s154, 2
        %s158 = sadd.s32 %s156, %s157
        %s159 = smul.addr %s158, 8
        %s160 = scalar_lea.vmem %s1, %s159
        %p161 = pneg %p70
        %p162 = pneg %p67
        %p163 = pneg %p98
        %p164 = pneg %p95
        %p165 = scmp.lt.s32.totalorder %s18, 1
        %s166 = scalar_select %p165, %s18, 1
        %p167 = scmp.lt.s32.totalorder %s19, 0
        %s168 = scalar_select %p167, %s19, 0
        %s169 = smul.addr %s168, 2
        %s170 = smul.addr %s166, 2
        %s171 = sadd.s32 %s169, %s170
        %s172 = smul.addr %s171, 8
        %s173 = scalar_lea.vmem %s2, %s172
        %p174 = scmp.lt.s32.totalorder %s18, 1
        %s175 = scalar_select %p174, %s18, 1
        %p176 = scmp.lt.s32.totalorder %s19, 0
        %s177 = scalar_select %p176, %s19, 0
        %s178 = smul.addr %s175, 2
        %s179 = sadd.s32 %s177, %s178
        %s180 = smul.addr %s179, 8
        %s181 = scalar_lea.vmem %s1, %s180
        %p182 = scmp.lt.s32.totalorder %s18, 1
        %s183 = scalar_select %p182, %s18, 1
        %p184 = scmp.lt.s32.totalorder %s19, 0
        %s185 = scalar_select %p184, %s19, 0
        %s186 = smul.addr %s185, 2
        %s187 = smul.addr %s183, 2
        %s188 = sadd.s32 %s186, %s187
        %s189 = smul.addr %s188, 8
        %s190 = scalar_lea.vmem %s2, %s189
        %v191 = vld [vmem:[%s181] sm:$0xff]
        %v192 = vld [vmem:[%s181 + $0x8] sm:$0xff]
        %s193 = sld [smem:[#allocation2]]
        %s194 = sld [smem:[#allocation2 + $0x1]]
        %s195 = sld [smem:[#allocation2 + $0x2]]
        %s196 = sld [smem:[#allocation2 + $0x3]]
        %s197 = sld [smem:[#allocation2 + $0x4]]
        %s198 = sld [smem:[#allocation2 + $0x5]]
        %s199 = sld [smem:[#allocation2 + $0x6]]
        %s200 = sld [smem:[#allocation2 + $0x7]]
        %s201 = sld [smem:[#allocation2 + $0x8]]
        %s202 = sld [smem:[#allocation2 + $0x9]]
        %s203 = sld [smem:[#allocation2 + $0xa]]
        %s204 = sld [smem:[#allocation2 + $0xb]]
        %v205 = vstv %s193
        %v206 = vmul.f32 %v205, %v191
        %v207 = vstv %s194
        %v208 = vmul.f32 %v207, %v192
        %v209 = vadd.f32 %v206, %v208
        %v210 = vstv %s201
        %v211 = vadd.f32 %v209, %v210
        %v212 = vmax.f32 %v211, 0.0
        %v213 = vstv %s197
        %v214 = vmul.f32 %v213, %v191
        %v215 = vstv %s198
        %v216 = vmul.f32 %v215, %v192
        %v217 = vadd.f32 %v214, %v216
        %v218 = vstv %s203
        %v219 = vadd.f32 %v217, %v218
        %v220 = vmax.f32 %v219, 0.0
        %v221 = vadd.f32 %v212, %v220
        %v222 = vstv %s195
        %v223 = vmul.f32 %v222, %v191
        %v224 = vstv %s196
        %v225 = vmul.f32 %v224, %v192
        %v226 = vadd.f32 %v223, %v225
        %v227 = vstv %s202
        %v228 = vadd.f32 %v226, %v227
        %v229 = vmax.f32 %v228, 0.0
        %v230 = vstv %s199
        %v231 = vmul.f32 %v230, %v191
        %v232 = vstv %s200
        %v233 = vmul.f32 %v232, %v192
        %v234 = vadd.f32 %v231, %v233
        %v235 = vstv %s204
        %v236 = vadd.f32 %v234, %v235
        %v237 = vmax.f32 %v236, 0.0
        %v238 = vadd.f32 %v229, %v237
        %v239 = vlaneseq
        %v240 = vshrl.u32 %v239, 7
        %v241 = vadd.s32 %v240, 8
        %v242 = vadd.s32 %v240, 16
        %v243 = vadd.s32 %v240, 24
        %v244 = vadd.s32 %v240, 32
        %v245 = vadd.s32 %v240, 40
        %v246 = vadd.s32 %v240, 48
        %v247 = vadd.s32 %v240, 56
        %v248 = vadd.s32 %v240, 64
        %v249 = vadd.s32 %v240, 72
        %v250 = vadd.s32 %v240, 80
        %v251 = vadd.s32 %v240, 88
        %v252 = vadd.s32 %v240, 96
        %v253 = vadd.s32 %v240, 104
        %v254 = vadd.s32 %v240, 112
        %v255 = vadd.s32 %v240, 120
        %v256 = vlaneseq
        %v257 = vand.u32 %v256, 127
        %v258 = vadd.s32 %v257, 128
        %v259 = vmul.u32 %v240, 2
        %v260 = vmul.u32 %v241, 2
        %v261 = vmul.u32 %v242, 2
        %v262 = vmul.u32 %v243, 2
        %v263 = vmul.u32 %v244, 2
        %v264 = vmul.u32 %v245, 2
        %v265 = vmul.u32 %v246, 2
        %v266 = vmul.u32 %v247, 2
        %v267 = vmul.u32 %v248, 2
        %v268 = vmul.u32 %v249, 2
        %v269 = vmul.u32 %v250, 2
        %v270 = vmul.u32 %v251, 2
        %v271 = vmul.u32 %v252, 2
        %v272 = vmul.u32 %v253, 2
        %v273 = vmul.u32 %v254, 2
        %v274 = vmul.u32 %v255, 2
        %vm275 = vcmp.eq.s32.totalorder %v257, %v259
        %vm276 = vcmp.eq.s32.totalorder %v258, %v259
        %vm277 = vcmp.eq.s32.totalorder %v257, %v260
        %vm278 = vcmp.eq.s32.totalorder %v258, %v260
        %vm279 = vcmp.eq.s32.totalorder %v257, %v261
        %vm280 = vcmp.eq.s32.totalorder %v258, %v261
        %vm281 = vcmp.eq.s32.totalorder %v257, %v262
        %vm282 = vcmp.eq.s32.totalorder %v258, %v262
        %vm283 = vcmp.eq.s32.totalorder %v257, %v263
        %vm284 = vcmp.eq.s32.totalorder %v258, %v263
        %vm285 = vcmp.eq.s32.totalorder %v257, %v264
        %vm286 = vcmp.eq.s32.totalorder %v258, %v264
        %vm287 = vcmp.eq.s32.totalorder %v257, %v265
        %vm288 = vcmp.eq.s32.totalorder %v258, %v265
        %vm289 = vcmp.eq.s32.totalorder %v257, %v266
        %vm290 = vcmp.eq.s32.totalorder %v258, %v266
        %vm291 = vcmp.eq.s32.totalorder %v257, %v267
        %vm292 = vcmp.eq.s32.totalorder %v258, %v267
        %vm293 = vcmp.eq.s32.totalorder %v257, %v268
        %vm294 = vcmp.eq.s32.totalorder %v258, %v268
        %vm295 = vcmp.eq.s32.totalorder %v257, %v269
        %vm296 = vcmp.eq.s32.totalorder %v258, %v269
        %vm297 = vcmp.eq.s32.totalorder %v257, %v270
        %vm298 = vcmp.eq.s32.totalorder %v258, %v270
        %vm299 = vcmp.eq.s32.totalorder %v257, %v271
        %vm300 = vcmp.eq.s32.totalorder %v258, %v271
        %vm301 = vcmp.eq.s32.totalorder %v257, %v272
        %vm302 = vcmp.eq.s32.totalorder %v258, %v272
        %vm303 = vcmp.eq.s32.totalorder %v257, %v273
        %vm304 = vcmp.eq.s32.totalorder %v258, %v273
        %vm305 = vcmp.eq.s32.totalorder %v257, %v274
        %vm306 = vcmp.eq.s32.totalorder %v258, %v274
        %v307 = vsel %vm275, 1.0, 0.0
        %v308 = vsel %vm276, 1.0, 0.0
        %v309 = vsel %vm277, 1.0, 0.0
        %v310 = vsel %vm278, 1.0, 0.0
        %v311 = vsel %vm279, 1.0, 0.0
        %v312 = vsel %vm280, 1.0, 0.0
        %v313 = vsel %vm281, 1.0, 0.0
        %v314 = vsel %vm282, 1.0, 0.0
        %v315 = vsel %vm283, 1.0, 0.0
        %v316 = vsel %vm284, 1.0, 0.0
        %v317 = vsel %vm285, 1.0, 0.0
        %v318 = vsel %vm286, 1.0, 0.0
        %v319 = vsel %vm287, 1.0, 0.0
        %v320 = vsel %vm288, 1.0, 0.0
        %v321 = vsel %vm289, 1.0, 0.0
        %v322 = vsel %vm290, 1.0, 0.0
        %v323 = vsel %vm291, 1.0, 0.0
        %v324 = vsel %vm292, 1.0, 0.0
        %v325 = vsel %vm293, 1.0, 0.0
        %v326 = vsel %vm294, 1.0, 0.0
        %v327 = vsel %vm295, 1.0, 0.0
        %v328 = vsel %vm296, 1.0, 0.0
        %v329 = vsel %vm297, 1.0, 0.0
        %v330 = vsel %vm298, 1.0, 0.0
        %v331 = vsel %vm299, 1.0, 0.0
        %v332 = vsel %vm300, 1.0, 0.0
        %v333 = vsel %vm301, 1.0, 0.0
        %v334 = vsel %vm302, 1.0, 0.0
        %v335 = vsel %vm303, 1.0, 0.0
        %v336 = vsel %vm304, 1.0, 0.0
        %v337 = vsel %vm305, 1.0, 0.0
        %v338 = vsel %vm306, 1.0, 0.0
        %v339 = vadd.s32 %v259, 1
        %v340 = vadd.s32 %v260, 1
        %v341 = vadd.s32 %v261, 1
        %v342 = vadd.s32 %v262, 1
        %v343 = vadd.s32 %v263, 1
        %v344 = vadd.s32 %v264, 1
        %v345 = vadd.s32 %v265, 1
        %v346 = vadd.s32 %v266, 1
        %v347 = vadd.s32 %v267, 1
        %v348 = vadd.s32 %v268, 1
        %v349 = vadd.s32 %v269, 1
        %v350 = vadd.s32 %v270, 1
        %v351 = vadd.s32 %v271, 1
        %v352 = vadd.s32 %v272, 1
        %v353 = vadd.s32 %v273, 1
        %v354 = vadd.s32 %v274, 1
        %vm355 = vcmp.eq.s32.totalorder %v257, %v339
        %vm356 = vcmp.eq.s32.totalorder %v258, %v339
        %vm357 = vcmp.eq.s32.totalorder %v257, %v340
        %vm358 = vcmp.eq.s32.totalorder %v258, %v340
        %vm359 = vcmp.eq.s32.totalorder %v257, %v341
        %vm360 = vcmp.eq.s32.totalorder %v258, %v341
        %vm361 = vcmp.eq.s32.totalorder %v257, %v342
        %vm362 = vcmp.eq.s32.totalorder %v258, %v342
        %vm363 = vcmp.eq.s32.totalorder %v257, %v343
        %vm364 = vcmp.eq.s32.totalorder %v258, %v343
        %vm365 = vcmp.eq.s32.totalorder %v257, %v344
        %vm366 = vcmp.eq.s32.totalorder %v258, %v344
        %vm367 = vcmp.eq.s32.totalorder %v257, %v345
        %vm368 = vcmp.eq.s32.totalorder %v258, %v345
        %vm369 = vcmp.eq.s32.totalorder %v257, %v346
        %vm370 = vcmp.eq.s32.totalorder %v258, %v346
        %vm371 = vcmp.eq.s32.totalorder %v257, %v347
        %vm372 = vcmp.eq.s32.totalorder %v258, %v347
        %vm373 = vcmp.eq.s32.totalorder %v257, %v348
        %vm374 = vcmp.eq.s32.totalorder %v258, %v348
        %vm375 = vcmp.eq.s32.totalorder %v257, %v349
        %vm376 = vcmp.eq.s32.totalorder %v258, %v349
        %vm377 = vcmp.eq.s32.totalorder %v257, %v350
        %vm378 = vcmp.eq.s32.totalorder %v258, %v350
        %vm379 = vcmp.eq.s32.totalorder %v257, %v351
        %vm380 = vcmp.eq.s32.totalorder %v258, %v351
        %vm381 = vcmp.eq.s32.totalorder %v257, %v352
        %vm382 = vcmp.eq.s32.totalorder %v258, %v352
        %vm383 = vcmp.eq.s32.totalorder %v257, %v353
        %vm384 = vcmp.eq.s32.totalorder %v258, %v353
        %vm385 = vcmp.eq.s32.totalorder %v257, %v354
        %vm386 = vcmp.eq.s32.totalorder %v258, %v354
        %v387 = vsel %vm355, 1.0, 0.0
        %v388 = vsel %vm356, 1.0, 0.0
        %v389 = vsel %vm357, 1.0, 0.0
        %v390 = vsel %vm358, 1.0, 0.0
        %v391 = vsel %vm359, 1.0, 0.0
        %v392 = vsel %vm360, 1.0, 0.0
        %v393 = vsel %vm361, 1.0, 0.0
        %v394 = vsel %vm362, 1.0, 0.0
        %v395 = vsel %vm363, 1.0, 0.0
        %v396 = vsel %vm364, 1.0, 0.0
        %v397 = vsel %vm365, 1.0, 0.0
        %v398 = vsel %vm366, 1.0, 0.0
        %v399 = vsel %vm367, 1.0, 0.0
        %v400 = vsel %vm368, 1.0, 0.0
        %v401 = vsel %vm369, 1.0, 0.0
        %v402 = vsel %vm370, 1.0, 0.0
        %v403 = vsel %vm371, 1.0, 0.0
        %v404 = vsel %vm372, 1.0, 0.0
        %v405 = vsel %vm373, 1.0, 0.0
        %v406 = vsel %vm374, 1.0, 0.0
        %v407 = vsel %vm375, 1.0, 0.0
        %v408 = vsel %vm376, 1.0, 0.0
        %v409 = vsel %vm377, 1.0, 0.0
        %v410 = vsel %vm378, 1.0, 0.0
        %v411 = vsel %vm379, 1.0, 0.0
        %v412 = vsel %vm380, 1.0, 0.0
        %v413 = vsel %vm381, 1.0, 0.0
        %v414 = vsel %vm382, 1.0, 0.0
        %v415 = vsel %vm383, 1.0, 0.0
        %v416 = vsel %vm384, 1.0, 0.0
        %v417 = vsel %vm385, 1.0, 0.0
        %v418 = vsel %vm386, 1.0, 0.0
        %419 = vmatpush.msra.mxu0 %v417
        %420 = vmatpush.msra.mxu0 %v415
        %421 = vmatpush.msra.mxu0 %v413
        %422 = vmatpush.msra.mxu0 %v411
        %423 = vmatpush.msra.mxu0 %v409
        %424 = vmatpush.msra.mxu0 %v407
        %425 = vmatpush.msra.mxu0 %v405
        %426 = vmatpush.msra.mxu0 %v403
        %427 = vmatpush.msra.mxu0 %v401
        %428 = vmatpush.msra.mxu0 %v399
        %429 = vmatpush.msra.mxu0 %v397
        %430 = vmatpush.msra.mxu0 %v395
        %431 = vmatpush.msra.mxu0 %v393
        %432 = vmatpush.msra.mxu0 %v391
        %433 = vmatpush.msra.mxu0 %v389
        %434 = vmatpush.msra.mxu0 %v387
        %435 = vmatmul.f32.gmra.mxu0 %v238
        %v436 = vpop.f32.mrf.mxu0
        %v437 = vadd.f32 0.0, %v436
        %438 = vdwg.mxu0
        %439 = vmatpush.msra.mxu0 %v418
        %440 = vmatpush.msra.mxu0 %v416
        %441 = vmatpush.msra.mxu0 %v414
        %442 = vmatpush.msra.mxu0 %v412
        %443 = vmatpush.msra.mxu0 %v410
        %444 = vmatpush.msra.mxu0 %v408
        %445 = vmatpush.msra.mxu0 %v406
        %446 = vmatpush.msra.mxu0 %v404
        %447 = vmatpush.msra.mxu0 %v402
        %448 = vmatpush.msra.mxu0 %v400
        %449 = vmatpush.msra.mxu0 %v398
        %450 = vmatpush.msra.mxu0 %v396
        %451 = vmatpush.msra.mxu0 %v394
        %452 = vmatpush.msra.mxu0 %v392
        %453 = vmatpush.msra.mxu0 %v390
        %454 = vmatpush.msra.mxu0 %v388
        %455 = vmatmul.f32.gmra.mxu0 %v238
        %v456 = vpop.f32.mrf.mxu0
        %v457 = vadd.f32 0.0, %v456
        %458 = vdwg.mxu0
        %459 = vmatpush.msra.mxu0 %v337
        %460 = vmatpush.msra.mxu0 %v335
        %461 = vmatpush.msra.mxu0 %v333
        %462 = vmatpush.msra.mxu0 %v331
        %463 = vmatpush.msra.mxu0 %v329
        %464 = vmatpush.msra.mxu0 %v327
        %465 = vmatpush.msra.mxu0 %v325
        %466 = vmatpush.msra.mxu0 %v323
        %467 = vmatpush.msra.mxu0 %v321
        %468 = vmatpush.msra.mxu0 %v319
        %469 = vmatpush.msra.mxu0 %v317
        %470 = vmatpush.msra.mxu0 %v315
        %471 = vmatpush.msra.mxu0 %v313
        %472 = vmatpush.msra.mxu0 %v311
        %473 = vmatpush.msra.mxu0 %v309
        %474 = vmatpush.msra.mxu0 %v307
        %475 = vmatmul.f32.gmra.mxu0 %v221
        %v476 = vpop.f32.mrf.mxu0
        %v477 = vadd.f32 %v437, %v476
        %478 = vdwg.mxu0
        %479 = vmatpush.msra.mxu0 %v338
        %480 = vmatpush.msra.mxu0 %v336
        %481 = vmatpush.msra.mxu0 %v334
        %482 = vmatpush.msra.mxu0 %v332
        %483 = vmatpush.msra.mxu0 %v330
        %484 = vmatpush.msra.mxu0 %v328
        %485 = vmatpush.msra.mxu0 %v326
        %486 = vmatpush.msra.mxu0 %v324
        %487 = vmatpush.msra.mxu0 %v322
        %488 = vmatpush.msra.mxu0 %v320
        %489 = vmatpush.msra.mxu0 %v318
        %490 = vmatpush.msra.mxu0 %v316
        %491 = vmatpush.msra.mxu0 %v314
        %492 = vmatpush.msra.mxu0 %v312
        %493 = vmatpush.msra.mxu0 %v310
        %494 = vmatpush.msra.mxu0 %v308
        %495 = vmatmul.f32.gmra.mxu0 %v221
        %v496 = vpop.f32.mrf.mxu0
        %v497 = vadd.f32 %v457, %v496
        %498 = vdwg.mxu0
        %499 = vst [vmem:[%s190] sm:$0xff] %v477
        %500 = vst [vmem:[%s190 + $0x8] sm:$0xff] %v497
        %p501 = scmp.lt.s32.totalorder %s18, 1
        %s502 = scalar_select %p501, %s18, 1
        %p503 = scmp.lt.s32.totalorder %s19, 0
        %s504 = scalar_select %p503, %s19, 0
        %s505 = smul.addr %s504, 2
        %s506 = smul.addr %s502, 2
        %s507 = sadd.s32 %s505, %s506
        %s508 = smul.addr %s507, 8
        %s509 = scalar_lea.vmem %s2, %s508
        // Predicated region
        $region33: #{model_forward.1} parent=27 // pred_check
          %p510 = pneg %p95
        $region34: #{model_forward.1} parent=27 // pred_check_branch
          %512 = sbr.rel (%p510) target = $region36
        $region35: #{model_forward.1} parent=27 // pred_region
          _
        $region36: #{model_forward.1} parent=27 // pred_fallthru
          _
      $region28: #{model_forward.1} parent=5 // pred_fallthru
        _
      %p513 = scmp.le.s32.totalorder 2, %s9
      // Predicated region
      $region37: #{model_forward.1} parent=5 // pred_check
        %p514 = pneg %p513
      $region38: #{model_forward.1} parent=5 // pred_check_branch
        %516 = sbr.rel (%p514) target = $region40
      $region39: #{model_forward.1} parent=5 // pred_region
        %s517 = ssub.s32 %s9, 2
        // Predicated region
        $region41: #{model_forward.1} parent=39 // pred_check
          %p518 = pneg %p101
        $region42: #{model_forward.1} parent=39 // pred_check_branch
          %520 = sbr.rel (%p518) target = $region44
        $region43: #{model_forward.1} parent=39 // pred_region
          %p521 = scmp.lt.s32.totalorder %s20, 1
          %s522 = scalar_select %p521, %s20, 1
          %p523 = scmp.lt.s32.totalorder %s21, 0
          %s524 = scalar_select %p523, %s21, 0
          %s525 = smul.addr %s524, 2
          %s526 = smul.addr %s522, 2
          %s527 = sadd.s32 %s525, %s526
          %s528 = smul.addr %s527, 8
          %s529 = scalar_lea.vmem %s2, %s528
        $region44: #{model_forward.1} parent=39 // pred_fallthru
          _
      $region40: #{model_forward.1} parent=5 // pred_fallthru
        _
    $region6: #{model_forward.1} parent=1 // loop_footer
      %s13 = sadd.s32 1, %s9
    $region7: #{model_forward.1} parent=1 // loop_footer_branch
      %8 = sbr.rel target = $region3
    $region8: #{model_forward.1} parent=1 // loop_exit
      _
    %530 = vsyncpa [#allocation3], 1
    %s531 = scalar_lea.sflag [#allocation3], 1
    %532 = vsyncpa %s531, 1

</llo_original>
